<compile_context>
chip_gen: v5e
topology: v5e:2x2
jax: 0.10.0
libtpu: 0.0.40
codegen_flags: <defaults>
</compile_context>

<pallas_src>
import jax
import jax.numpy as jnp
from jax.experimental import pallas as pl
from jax.experimental.pallas import tpu as pltpu


_TILE_B_MAX = 8192  # 32 * 8192 * 4 B = 1 MiB input tile (x2 for double buffer)


def _round_up(x, m):
    return (x + m - 1) // m * m


def _leaky_relu(x, slope=0.2):
    # slope in (0, 1): max(x, slope*x) == where(x > 0, x, slope*x)
    return jnp.maximum(x, slope * x)


def discriminator_kernel(x_ref,
                         w1_ref, b1_ref,
                         w2_ref, b2_ref,
                         w3_ref, b3_ref,
                         w4_ref, b4_ref,
                         o_ref):
    # Activations are (features, TILE_B): features on sublanes, batch on lanes.
    h = x_ref[...]                                                     # (nz, TB)

    h = _leaky_relu(
        jnp.dot(w1_ref[...], h, preferred_element_type=jnp.float32) + b1_ref[...])
    h = _leaky_relu(
        jnp.dot(w2_ref[...], h, preferred_element_type=jnp.float32) + b2_ref[...])
    h = _leaky_relu(
        jnp.dot(w3_ref[...], h, preferred_element_type=jnp.float32) + b3_ref[...])
    h = jnp.dot(w4_ref[...], h, preferred_element_type=jnp.float32) + b4_ref[...]

    o_ref[...] = h.astype(o_ref.dtype)                                 # (1, TB)


def discriminator_forward(x, params):
    """x: (B, nz) float32.

    params: list of (W, b) per layer with W in PyTorch layout (out, in) and
    b as a (out, 1) column vector.
    Returns (B, 1) float32, matching Discriminator.forward.
    """
    B, nz = x.shape

    tile_b = min(_TILE_B_MAX, _round_up(B, 128))
    b_pad = _round_up(B, tile_b)

    # Transpose to (features, batch) and pad the batch axis to tile_b multiple.
    xt = jnp.pad(x.T, ((0, 0), (0, b_pad - B)))

    flat = []
    for (w, b) in params:
        flat.extend([w, b])

    # Weights/biases: full-array blocks, constant index_map -> VMEM-resident.
    const_specs = [pl.BlockSpec(a.shape, lambda i: (0, 0)) for a in flat]

    out = pl.pallas_call(
        discriminator_kernel,
        out_shape=jax.ShapeDtypeStruct((1, b_pad), jnp.float32),
        grid=(b_pad // tile_b,),
        in_specs=[pl.BlockSpec((nz, tile_b), lambda i: (0, i))] + const_specs,
        out_specs=pl.BlockSpec((1, tile_b), lambda i: (0, i)),
        compiler_params=pltpu.CompilerParams(
            dimension_semantics=("parallel",)),
    )(xt, *flat)

    return out[:, :B].T  # (B, 1)


def init_params(key, nz=32, ndf=32):
    """Mirror Discriminator.weights_init: W ~ N(0, 0.02), b = 0.
    Weights kept in PyTorch (out, in) layout; biases as (out, 1) columns."""
    dims = [(nz, ndf), (ndf, ndf // 2), (ndf // 2, ndf // 4), (ndf // 4, 1)]
    params = []
    for (din, dout) in dims:
        key, sub = jax.random.split(key)
        w = 0.02 * jax.random.normal(sub, (dout, din), dtype=jnp.float32)
        b = jnp.zeros((dout, 1), dtype=jnp.float32)
        params.append((w, b))
    return params


def reference_forward(x, params):
    h = x
    for i, (w, b) in enumerate(params):
        h = h @ w.T + b.T
        if i < len(params) - 1:
            h = jnp.where(h > 0, h, 0.2 * h)
    return h


if __name__ == "__main__":
    key = jax.random.PRNGKey(0)
    k_param, k_x = jax.random.split(key)

    nz, ndf, batch = 32, 32, 8
    params = init_params(k_param, nz=nz, ndf=ndf)
    x = jax.random.normal(k_x, (batch, nz), dtype=jnp.float32)

    out = discriminator_forward(x, params)
    out = jax.block_until_ready(out)

    ref = reference_forward(x, params)
    assert out.shape == (batch, 1), out.shape
    assert jnp.allclose(out, ref, atol=1e-5, rtol=1e-5), (out, ref)

    print("KERNEL_OK")
</pallas_src>

<mosaic_0001>
module attributes {stable_mosaic.version = 11 : i64} {
  func.func @discriminator_kernel(%arg0: i32, %arg1: memref<32x128xf32, #tpu.memory_space<vmem>>, %arg2: memref<32x32xf32, #tpu.memory_space<vmem>>, %arg3: memref<32x1xf32, #tpu.memory_space<vmem>>, %arg4: memref<16x32xf32, #tpu.memory_space<vmem>>, %arg5: memref<16x1xf32, #tpu.memory_space<vmem>>, %arg6: memref<8x16xf32, #tpu.memory_space<vmem>>, %arg7: memref<8x1xf32, #tpu.memory_space<vmem>>, %arg8: memref<1x8xf32, #tpu.memory_space<vmem>>, %arg9: memref<1x1xf32, #tpu.memory_space<vmem>>, %arg10: memref<1x128xf32, #tpu.memory_space<vmem>>) attributes {dimension_semantics = [#tpu.dimension_semantics<parallel>], iteration_bounds = array<i64: 1>, scalar_prefetch = 0 : i64, scratch_operands = 0 : i64, tpu.core_type = #tpu.core_type<tc>, window_params = [{transform_indices = @transform_0, window_bounds = array<i64: 32, 128>}, {pipeline_mode = #tpu.pipeline_mode<synchronous>, transform_indices = @transform_1, window_bounds = array<i64: 32, 32>}, {pipeline_mode = #tpu.pipeline_mode<synchronous>, transform_indices = @transform_2, window_bounds = array<i64: 32, 1>}, {pipeline_mode = #tpu.pipeline_mode<synchronous>, transform_indices = @transform_3, window_bounds = array<i64: 16, 32>}, {pipeline_mode = #tpu.pipeline_mode<synchronous>, transform_indices = @transform_4, window_bounds = array<i64: 16, 1>}, {pipeline_mode = #tpu.pipeline_mode<synchronous>, transform_indices = @transform_5, window_bounds = array<i64: 8, 16>}, {pipeline_mode = #tpu.pipeline_mode<synchronous>, transform_indices = @transform_6, window_bounds = array<i64: 8, 1>}, {pipeline_mode = #tpu.pipeline_mode<synchronous>, transform_indices = @transform_7, window_bounds = array<i64: 1, 8>}, {pipeline_mode = #tpu.pipeline_mode<synchronous>, transform_indices = @transform_8, window_bounds = array<i64: 1, 1>}, {transform_indices = @transform_9, window_bounds = array<i64: 1, 128>}]} {
    %c0 = arith.constant 0 : index
    %c0_0 = arith.constant 0 : index
    %0 = vector.load %arg1[%c0, %c0_0] : memref<32x128xf32, #tpu.memory_space<vmem>>, vector<32x128xf32>
    %c0_1 = arith.constant 0 : index
    %c0_2 = arith.constant 0 : index
    %1 = vector.load %arg2[%c0_1, %c0_2] : memref<32x32xf32, #tpu.memory_space<vmem>>, vector<32x32xf32>
    %cst = arith.constant dense<0.000000e+00> : vector<32x128xf32>
    %2 = tpu.matmul %1, %0, %cst {dimension_numbers = #tpu.dot_dimension_numbers<[1], [0], [0], [1], [0, 0, 1, 1], [], []>} : vector<32x32xf32>, vector<32x128xf32>, vector<32x128xf32> -> vector<32x128xf32>
    %c0_3 = arith.constant 0 : index
    %c0_4 = arith.constant 0 : index
    %3 = vector.load %arg3[%c0_3, %c0_4] : memref<32x1xf32, #tpu.memory_space<vmem>>, vector<32x1xf32>
    %4 = vector.broadcast %3 : vector<32x1xf32> to vector<32x128xf32>
    %5 = arith.addf %2, %4 : vector<32x128xf32>
    %cst_5 = arith.constant 2.000000e-01 : f32
    %6 = vector.broadcast %cst_5 : f32 to vector<32x128xf32>
    %7 = arith.mulf %6, %5 : vector<32x128xf32>
    %8 = arith.maximumf %5, %7 : vector<32x128xf32>
    %c0_6 = arith.constant 0 : index
    %c0_7 = arith.constant 0 : index
    %9 = vector.load %arg4[%c0_6, %c0_7] : memref<16x32xf32, #tpu.memory_space<vmem>>, vector<16x32xf32>
    %cst_8 = arith.constant dense<0.000000e+00> : vector<16x128xf32>
    %10 = tpu.matmul %9, %8, %cst_8 {dimension_numbers = #tpu.dot_dimension_numbers<[1], [0], [0], [1], [0, 0, 1, 1], [], []>} : vector<16x32xf32>, vector<32x128xf32>, vector<16x128xf32> -> vector<16x128xf32>
    %c0_9 = arith.constant 0 : index
    %c0_10 = arith.constant 0 : index
    %11 = vector.load %arg5[%c0_9, %c0_10] : memref<16x1xf32, #tpu.memory_space<vmem>>, vector<16x1xf32>
    %12 = vector.broadcast %11 : vector<16x1xf32> to vector<16x128xf32>
    %13 = arith.addf %10, %12 : vector<16x128xf32>
    %cst_11 = arith.constant 2.000000e-01 : f32
    %14 = vector.broadcast %cst_11 : f32 to vector<16x128xf32>
    %15 = arith.mulf %14, %13 : vector<16x128xf32>
    %16 = arith.maximumf %13, %15 : vector<16x128xf32>
    %c0_12 = arith.constant 0 : index
    %c0_13 = arith.constant 0 : index
    %17 = vector.load %arg6[%c0_12, %c0_13] : memref<8x16xf32, #tpu.memory_space<vmem>>, vector<8x16xf32>
    %cst_14 = arith.constant dense<0.000000e+00> : vector<8x128xf32>
    %18 = tpu.matmul %17, %16, %cst_14 {dimension_numbers = #tpu.dot_dimension_numbers<[1], [0], [0], [1], [0, 0, 1, 1], [], []>} : vector<8x16xf32>, vector<16x128xf32>, vector<8x128xf32> -> vector<8x128xf32>
    %c0_15 = arith.constant 0 : index
    %c0_16 = arith.constant 0 : index
    %19 = vector.load %arg7[%c0_15, %c0_16] : memref<8x1xf32, #tpu.memory_space<vmem>>, vector<8x1xf32>
    %20 = vector.broadcast %19 : vector<8x1xf32> to vector<8x128xf32>
    %21 = arith.addf %18, %20 : vector<8x128xf32>
    %cst_17 = arith.constant 2.000000e-01 : f32
    %22 = vector.broadcast %cst_17 : f32 to vector<8x128xf32>
    %23 = arith.mulf %22, %21 : vector<8x128xf32>
    %24 = arith.maximumf %21, %23 : vector<8x128xf32>
    %c0_18 = arith.constant 0 : index
    %c0_19 = arith.constant 0 : index
    %25 = vector.load %arg8[%c0_18, %c0_19] : memref<1x8xf32, #tpu.memory_space<vmem>>, vector<1x8xf32>
    %cst_20 = arith.constant dense<0.000000e+00> : vector<1x128xf32>
    %26 = tpu.matmul %25, %24, %cst_20 {dimension_numbers = #tpu.dot_dimension_numbers<[1], [0], [0], [1], [0, 0, 1, 1], [], []>} : vector<1x8xf32>, vector<8x128xf32>, vector<1x128xf32> -> vector<1x128xf32>
    %c0_21 = arith.constant 0 : index
    %c0_22 = arith.constant 0 : index
    %27 = vector.load %arg9[%c0_21, %c0_22] : memref<1x1xf32, #tpu.memory_space<vmem>>, vector<1x1xf32>
    %28 = vector.broadcast %27 : vector<1x1xf32> to vector<1x128xf32>
    %29 = arith.addf %26, %28 : vector<1x128xf32>
    %c0_23 = arith.constant 0 : index
    %c0_24 = arith.constant 0 : index
    %30 = vector.load %arg10[%c0_23, %c0_24] : memref<1x128xf32, #tpu.memory_space<vmem>>, vector<1x128xf32>
    tpu.vector_store %arg10[%c0_23, %c0_24], %29 {strides = array<i32>} : memref<1x128xf32, #tpu.memory_space<vmem>>, vector<1x128xf32>,
    return
  }
  func.func @transform_0(%arg0: i32) -> (i32, i32) {
    %c0_i32 = arith.constant 0 : i32
    %c0_i32_0 = arith.constant 0 : i32
    return %c0_i32, %arg0 : i32, i32
  }
  func.func @transform_1(%arg0: i32) -> (i32, i32) {
    %c0_i32 = arith.constant 0 : i32
    %c0_i32_0 = arith.constant 0 : i32
    %c0_i32_1 = arith.constant 0 : i32
    return %c0_i32, %c0_i32_0 : i32, i32
  }
  func.func @transform_2(%arg0: i32) -> (i32, i32) {
    %c0_i32 = arith.constant 0 : i32
    %c0_i32_0 = arith.constant 0 : i32
    %c0_i32_1 = arith.constant 0 : i32
    return %c0_i32, %c0_i32_0 : i32, i32
  }
  func.func @transform_3(%arg0: i32) -> (i32, i32) {
    %c0_i32 = arith.constant 0 : i32
    %c0_i32_0 = arith.constant 0 : i32
    %c0_i32_1 = arith.constant 0 : i32
    return %c0_i32, %c0_i32_0 : i32, i32
  }
  func.func @transform_4(%arg0: i32) -> (i32, i32) {
    %c0_i32 = arith.constant 0 : i32
    %c0_i32_0 = arith.constant 0 : i32
    %c0_i32_1 = arith.constant 0 : i32
    return %c0_i32, %c0_i32_0 : i32, i32
  }
  func.func @transform_5(%arg0: i32) -> (i32, i32) {
    %c0_i32 = arith.constant 0 : i32
    %c0_i32_0 = arith.constant 0 : i32
    %c0_i32_1 = arith.constant 0 : i32
    return %c0_i32, %c0_i32_0 : i32, i32
  }
  func.func @transform_6(%arg0: i32) -> (i32, i32) {
    %c0_i32 = arith.constant 0 : i32
    %c0_i32_0 = arith.constant 0 : i32
    %c0_i32_1 = arith.constant 0 : i32
    return %c0_i32, %c0_i32_0 : i32, i32
  }
  func.func @transform_7(%arg0: i32) -> (i32, i32) {
    %c0_i32 = arith.constant 0 : i32
    %c0_i32_0 = arith.constant 0 : i32
    %c0_i32_1 = arith.constant 0 : i32
    return %c0_i32, %c0_i32_0 : i32, i32
  }
  func.func @transform_8(%arg0: i32) -> (i32, i32) {
    %c0_i32 = arith.constant 0 : i32
    %c0_i32_0 = arith.constant 0 : i32
    %c0_i32_1 = arith.constant 0 : i32
    return %c0_i32, %c0_i32_0 : i32, i32
  }
  func.func @transform_9(%arg0: i32) -> (i32, i32) {
    %c0_i32 = arith.constant 0 : i32
    %c0_i32_0 = arith.constant 0 : i32
    return %c0_i32, %arg0 : i32, i32
  }
}

</mosaic_0001>

<llo_original>
// kernel: tpu_custom_call.1
$region0: #{tpu_custom_call.1}
  #allocation0 [shape = 'u32[]', space=smem, size = 0x4, offset = 0x4, fixed_abs, tag = 'smem constant byte address 0x4 - core index']
  #allocation1 [shape = 'u32[72,128]{1,0:T(1,128)}', space=vmem, size = 0x9000, scoped, tag = 'internal scratch']
  #allocation2 [shape = 'f32[1,1]{1,0:T(1,128)S(1)}', space=vmem, size = 0x200, scoped, tag = 'scoped memory for tpu_custom_call.1']
  %s0 = inlined_call_operand.vmem [shape: f32[32,128], index: 0, kind: input, shape index: {}]
  %s1 = inlined_call_operand.hbm [shape: f32[32,32], index: 1, kind: input, shape index: {}]
  %s2 = inlined_call_operand.vmem [shape: f32[32,1], index: 2, kind: input, shape index: {}]
  %s3 = inlined_call_operand.vmem [shape: f32[16,32], index: 3, kind: input, shape index: {}]
  %s4 = inlined_call_operand.vmem [shape: f32[16,1], index: 4, kind: input, shape index: {}]
  %s5 = inlined_call_operand.vmem [shape: f32[8,16], index: 5, kind: input, shape index: {}]
  %s6 = inlined_call_operand.vmem [shape: f32[8,1], index: 6, kind: input, shape index: {}]
  %s7 = inlined_call_operand.vmem [shape: f32[1,8], index: 7, kind: input, shape index: {}]
  %s8 = inlined_call_operand.<no memory space> [shape: f32[1,1], index: 8, kind: input, shape index: {}]
  %s9 = inlined_call_operand.hbm [shape: f32[1,128], index: 9, kind: output, shape index: {}]
  %s10 = sld [smem:[#allocation0]]
  $region50: #{tpu_custom_call.1} parent=0
    _
  %s12 = ssub.s32 1, %s10
  %s13 = scalar_select 0, %s12, %s10
  %v14 = vstv %s8
  %15 = vst [vmem:[#allocation2] sm:$0x1] %v14
  $region1: #{tpu_custom_call.1} parent=0
    #allocation3 [shape = 'u8[16384]{0}', space=vmem, size = 0x4000, scoped, tag = 'input window, operand 1, single buffered']
    #allocation4 [shape = 's32[1]{0}', space=sflag, size = 0x4, scoped, tag = 'scoped memory for tpu_custom_call.1']
    #allocation5 [shape = 's32[1]{0}', space=sflag, size = 0x4, scoped, tag = 'scoped memory for tpu_custom_call.1']
    #allocation6 [shape = 'u8[512]{0}', space=vmem, size = 0x400, scoped, tag = 'output window, operand 0, single buffered']
    %16 = vsyncpa [#allocation4], 0
    %17 = vsyncpa [#allocation5], 0
    // Predicated region
    $region2: #{tpu_custom_call.1} parent=1 // pred_check
      _
    $region3: #{tpu_custom_call.1} parent=1 // pred_check_branch
      %19 = sbr.rel (0) target = $region5
    $region4: #{tpu_custom_call.1} parent=1 // pred_region
      _
    $region5: #{tpu_custom_call.1} parent=1 // pred_fallthru
      _
    // Predicated region
    $region6: #{tpu_custom_call.1} parent=1 // pred_check
      _
    $region7: #{tpu_custom_call.1} parent=1 // pred_check_branch
      %21 = sbr.rel (0) target = $region9
    $region8: #{tpu_custom_call.1} parent=1 // pred_region
      %23 = vsyncadd [#allocation4], 0
      %s24 = sshll.u32 %s1, 4
      %s25 = int_to_ptr.hbm [resolvable:$true] %s24
      %s26 = sshll.u32 [#allocation3], 4
      %s27 = int_to_ptr.vmem [resolvable:$true] %s26
      %32 = dma.hbm_to_vmem [thread:$0]  %s25, 512, %s27, [#allocation4], 128, 128, 8
    $region9: #{tpu_custom_call.1} parent=1 // pred_fallthru
      _
    // Predicated region
    $region10: #{tpu_custom_call.1} parent=1 // pred_check
      _
    $region11: #{tpu_custom_call.1} parent=1 // pred_check_branch
      %34 = sbr.rel (0) target = $region13
    $region12: #{tpu_custom_call.1} parent=1 // pred_region
      _
    $region13: #{tpu_custom_call.1} parent=1 // pred_fallthru
      _
    // Predicated region
    $region14: #{tpu_custom_call.1} parent=1 // pred_check
      _
    $region15: #{tpu_custom_call.1} parent=1 // pred_check_branch
      %36 = sbr.rel (0) target = $region17
    $region16: #{tpu_custom_call.1} parent=1 // pred_region
      _
    $region17: #{tpu_custom_call.1} parent=1 // pred_fallthru
      _
    // Predicated region
    $region18: #{tpu_custom_call.1} parent=1 // pred_check
      _
    $region19: #{tpu_custom_call.1} parent=1 // pred_check_branch
      %38 = sbr.rel (0) target = $region21
    $region20: #{tpu_custom_call.1} parent=1 // pred_region
      _
    $region21: #{tpu_custom_call.1} parent=1 // pred_fallthru
      _
    // Predicated region
    $region22: #{tpu_custom_call.1} parent=1 // pred_check
      _
    $region23: #{tpu_custom_call.1} parent=1 // pred_check_branch
      %40 = sbr.rel (0) target = $region25
    $region24: #{tpu_custom_call.1} parent=1 // pred_region
      _
    $region25: #{tpu_custom_call.1} parent=1 // pred_fallthru
      _
    // Predicated region
    $region26: #{tpu_custom_call.1} parent=1 // pred_check
      _
    $region27: #{tpu_custom_call.1} parent=1 // pred_check_branch
      %42 = sbr.rel (0) target = $region29
    $region28: #{tpu_custom_call.1} parent=1 // pred_region
      _
    $region29: #{tpu_custom_call.1} parent=1 // pred_fallthru
      _
    // Predicated region
    $region30: #{tpu_custom_call.1} parent=1 // pred_check
      _
    $region31: #{tpu_custom_call.1} parent=1 // pred_check_branch
      %44 = sbr.rel (0) target = $region33
    $region32: #{tpu_custom_call.1} parent=1 // pred_region
      _
    $region33: #{tpu_custom_call.1} parent=1 // pred_fallthru
      _
    // Predicated region
    $region34: #{tpu_custom_call.1} parent=1 // pred_check
      _
    $region35: #{tpu_custom_call.1} parent=1 // pred_check_branch
      %46 = sbr.rel (0) target = $region37
    $region36: #{tpu_custom_call.1} parent=1 // pred_region
      _
    $region37: #{tpu_custom_call.1} parent=1 // pred_fallthru
      _
    // Predicated region
    $region38: #{tpu_custom_call.1} parent=1 // pred_check
      _
    $region39: #{tpu_custom_call.1} parent=1 // pred_check_branch
      %48 = sbr.rel (0) target = $region41
    $region40: #{tpu_custom_call.1} parent=1 // pred_region
      %50 = dma.done [#allocation4], 512
    $region41: #{tpu_custom_call.1} parent=1 // pred_fallthru
      _
    %v51 = vld [vmem:[%s0] sm:$0xff]
    %v52 = vld [vmem:[%s0 + $0x8] sm:$0xff]
    %v53 = vld [vmem:[%s0 + $0x10] sm:$0xff]
    %v54 = vld [vmem:[%s0 + $0x18] sm:$0xff]
    %v55 = vld [vmem:[#allocation3] sm:$0xff]
    %v56 = vld [vmem:[#allocation3 + $0x8] sm:$0xff]
    %v57 = vld [vmem:[#allocation3 + $0x10] sm:$0xff]
    %v58 = vld [vmem:[#allocation3 + $0x18] sm:$0xff]
    %v59 = vld [vmem:[%s2] sm:$0xff]
    %v60 = vld [vmem:[%s2 + $0x8] sm:$0xff]
    %v61 = vld [vmem:[%s2 + $0x10] sm:$0xff]
    %v62 = vld [vmem:[%s2 + $0x18] sm:$0xff]
    %64 = vset.pattern.permute.xlu0 0
    %65 = vperm.xlu0 %64, %v59
    %v66 = vpop.permute.xlu0 %65
    %69 = vset.pattern.permute.xlu0 0
    %70 = vperm.xlu0 %69, %v60
    %v71 = vpop.permute.xlu0 %70
    %74 = vset.pattern.permute.xlu0 0
    %75 = vperm.xlu0 %74, %v61
    %v76 = vpop.permute.xlu0 %75
    %79 = vset.pattern.permute.xlu0 0
    %80 = vperm.xlu0 %79, %v62
    %v81 = vpop.permute.xlu0 %80
    %vm83 = vcmask 261120
    %v85 = vsel %vm83, %v55, 0
    %v88 = vsel %vm83, %v56, 0
    %v91 = vsel %vm83, %v57, 0
    %v94 = vsel %vm83, %v58, 0
    %96 = vmatpush.msra.mxu0 0.0
    %97 = vmatpush.msra.mxu0 0.0
    %98 = vmatpush.msra.mxu0 0.0
    %99 = vmatpush.msra.mxu0 0.0
    %100 = vmatpush.msra.mxu0 0.0
    %101 = vmatpush.msra.mxu0 0.0
    %102 = vmatpush.msra.mxu0 0.0
    %103 = vmatpush.msra.mxu0 0.0
    %104 = vmatpush.msra.mxu0 0.0
    %105 = vmatpush.msra.mxu0 0.0
    %106 = vmatpush.msra.mxu0 0.0
    %107 = vmatpush.msra.mxu0 0.0
    %108 = vmatpush.msra.mxu0 %v54
    %109 = vmatpush.msra.mxu0 %v53
    %110 = vmatpush.msra.mxu0 %v52
    %111 = vmatpush.msra.mxu0 %v51
    %112 = vmatmul.f32.gmra.mxu0 %v85
    %v113 = vpop.f32.mrf.mxu0
    %v114 = vadd.f32 %v66, %v113
    %115 = vmatmul.f32.gmra.mxu0 %v88
    %v116 = vpop.f32.mrf.mxu0
    %v117 = vadd.f32 %v71, %v116
    %118 = vmatmul.f32.gmra.mxu0 %v91
    %v119 = vpop.f32.mrf.mxu0
    %v120 = vadd.f32 %v76, %v119
    %121 = vmatmul.f32.gmra.mxu0 %v94
    %v122 = vpop.f32.mrf.mxu0
    %v123 = vadd.f32 %v81, %v122
    %124 = vdwg.mxu0
    %v125 = vmul.f32 %v114, 0.2
    %v126 = vmul.f32 %v117, 0.2
    %v127 = vmul.f32 %v120, 0.2
    %v128 = vmul.f32 %v123, 0.2
    %v129 = vmax.f32 %v114, %v125
    %v130 = vmax.f32 %v117, %v126
    %v131 = vmax.f32 %v120, %v127
    %v132 = vmax.f32 %v123, %v128
    %v133 = vld [vmem:[%s3] sm:$0xff]
    %v134 = vld [vmem:[%s3 + $0x8] sm:$0xff]
    %v135 = vld [vmem:[%s4] sm:$0xff]
    %v136 = vld [vmem:[%s4 + $0x8] sm:$0xff]
    %138 = vset.pattern.permute.xlu0 0
    %139 = vperm.xlu0 %138, %v135
    %v140 = vpop.permute.xlu0 %139
    %143 = vset.pattern.permute.xlu0 0
    %144 = vperm.xlu0 %143, %v136
    %v145 = vpop.permute.xlu0 %144
    %v148 = vsel %vm83, %v133, 0
    %v151 = vsel %vm83, %v134, 0
    %153 = vmatpush.msra.mxu0 0.0
    %154 = vmatpush.msra.mxu0 0.0
    %155 = vmatpush.msra.mxu0 0.0
    %156 = vmatpush.msra.mxu0 0.0
    %157 = vmatpush.msra.mxu0 0.0
    %158 = vmatpush.msra.mxu0 0.0
    %159 = vmatpush.msra.mxu0 0.0
    %160 = vmatpush.msra.mxu0 0.0
    %161 = vmatpush.msra.mxu0 0.0
    %162 = vmatpush.msra.mxu0 0.0
    %163 = vmatpush.msra.mxu0 0.0
    %164 = vmatpush.msra.mxu0 0.0
    %165 = vmatpush.msra.mxu0 %v132
    %166 = vmatpush.msra.mxu0 %v131
    %167 = vmatpush.msra.mxu0 %v130
    %168 = vmatpush.msra.mxu0 %v129
    %169 = vmatmul.f32.gmra.mxu0 %v148
    %v170 = vpop.f32.mrf.mxu0
    %v171 = vadd.f32 %v140, %v170
    %172 = vmatmul.f32.gmra.mxu0 %v151
    %v173 = vpop.f32.mrf.mxu0
    %v174 = vadd.f32 %v145, %v173
    %175 = vdwg.mxu0
    %v176 = vmul.f32 %v171, 0.2
    %v177 = vmul.f32 %v174, 0.2
    %v178 = vmax.f32 %v171, %v176
    %v179 = vmax.f32 %v174, %v177
    %v180 = vld [vmem:[%s5] sm:$0xff]
    %v181 = vld [vmem:[%s6] sm:$0xff]
    %183 = vset.pattern.permute.xlu0 0
    %184 = vperm.xlu0 %183, %v181
    %v185 = vpop.permute.xlu0 %184
    %vm187 = vcmask 130048
    %v189 = vsel %vm187, %v180, 0
    %191 = vmatpush.msra.mxu0 0.0
    %192 = vmatpush.msra.mxu0 0.0
    %193 = vmatpush.msra.mxu0 0.0
    %194 = vmatpush.msra.mxu0 0.0
    %195 = vmatpush.msra.mxu0 0.0
    %196 = vmatpush.msra.mxu0 0.0
    %197 = vmatpush.msra.mxu0 0.0
    %198 = vmatpush.msra.mxu0 0.0
    %199 = vmatpush.msra.mxu0 0.0
    %200 = vmatpush.msra.mxu0 0.0
    %201 = vmatpush.msra.mxu0 0.0
    %202 = vmatpush.msra.mxu0 0.0
    %203 = vmatpush.msra.mxu0 0.0
    %204 = vmatpush.msra.mxu0 0.0
    %205 = vmatpush.msra.mxu0 %v179
    %206 = vmatpush.msra.mxu0 %v178
    %207 = vmatmul.f32.gmra.mxu0 %v189
    %v208 = vpop.f32.mrf.mxu0
    %v209 = vadd.f32 %v185, %v208
    %210 = vdwg.mxu0
    %v211 = vmul.f32 %v209, 0.2
    %v212 = vmax.f32 %v209, %v211
    %v213 = vld [vmem:[%s7] sm:$0x1]
    %v214 = vld [vmem:[#allocation2] sm:$0x1]
    %216 = vset.pattern.permute.xlu0 0
    %217 = vperm.xlu0 %216, %v214
    %v218 = vpop.permute.xlu0 %217
    %v220 = vperm.slane %v218, 0
    %vm221 = vcmask 64512
    %v223 = vsel %vm221, %v213, 0
    %225 = vmatpush.msra.mxu0 0.0
    %226 = vmatpush.msra.mxu0 0.0
    %227 = vmatpush.msra.mxu0 0.0
    %228 = vmatpush.msra.mxu0 0.0
    %229 = vmatpush.msra.mxu0 0.0
    %230 = vmatpush.msra.mxu0 0.0
    %231 = vmatpush.msra.mxu0 0.0
    %232 = vmatpush.msra.mxu0 0.0
    %233 = vmatpush.msra.mxu0 0.0
    %234 = vmatpush.msra.mxu0 0.0
    %235 = vmatpush.msra.mxu0 0.0
    %236 = vmatpush.msra.mxu0 0.0
    %237 = vmatpush.msra.mxu0 0.0
    %238 = vmatpush.msra.mxu0 0.0
    %239 = vmatpush.msra.mxu0 0.0
    %240 = vmatpush.msra.mxu0 %v212
    %241 = vmatmul.f32.gmra.mxu0 %v223
    %v242 = vpop.f32.mrf.mxu0
    %v243 = vadd.f32 %v220, %v242
    %244 = vdwg.mxu0
    %245 = vst [vmem:[#allocation6] sm:$0x1] %v243
    // Predicated region
    $region42: #{tpu_custom_call.1} parent=1 // pred_check
      _
    $region43: #{tpu_custom_call.1} parent=1 // pred_check_branch
      %247 = sbr.rel (0) target = $region45
    $region44: #{tpu_custom_call.1} parent=1 // pred_region
      %249 = vsyncadd [#allocation5], 0
      %s251 = sshll.u32 [#allocation6], 4
      %s252 = int_to_ptr.vmem [resolvable:$true] %s251
      %s253 = sshll.u32 %s9, 4
      %s254 = int_to_ptr.hbm [resolvable:$true] %s253
      %256 = dma.vmem_to_hbm [thread:$0]  %s252, 16, %s254, [#allocation5]
    $region45: #{tpu_custom_call.1} parent=1 // pred_fallthru
      _
    // Predicated region
    $region46: #{tpu_custom_call.1} parent=1 // pred_check
      _
    $region47: #{tpu_custom_call.1} parent=1 // pred_check_branch
      %258 = sbr.rel (0) target = $region49
    $region48: #{tpu_custom_call.1} parent=1 // pred_region
      %260 = dma.done [#allocation5], 16
    $region49: #{tpu_custom_call.1} parent=1 // pred_fallthru
      _
    %261 = vsyncpa [#allocation4], 1
    %262 = vsyncpa [#allocation5], 1

</llo_original>
